<compile_context>
chip_gen: v6e
topology: v6e:2x2x1
jax: 0.10.0
libtpu: 0.0.40
codegen_flags: <defaults>
</compile_context>

<pallas_src>
import functools

import jax
import jax.numpy as jnp
from jax.experimental import pallas as pl
from jax.experimental.pallas import tpu as pltpu


# ---------------------------------------------------------------------------
# Pallas kernel (transposed / batch-on-lanes layout):
#   x_ref : [F,  Bblk]          w1 : [H1, F]   b1 : [H1, 1]
#   h1    : [H1, Bblk]          w2 : [H2, H1]  b2 : [H2, 1]
#   h2    : [H2, Bblk]          w3 : [O,  H2]  b3 : [O,  1]
#   o_ref : [O,  Bblk]
# All BatchNorm affines are pre-folded into w*/b* in the wrapper, so the body is
# pure MXU dot + ReLU + lane-broadcast bias add.
# ---------------------------------------------------------------------------
def mlp_kernel(x_ref, w1_ref, b1_ref, w2_ref, b2_ref, w3_ref, b3_ref, o_ref):
    # Layer 1 (numeric-input BN folded into w1/b1): Linear -> ReLU
    h = jnp.dot(w1_ref[...], x_ref[...],
                preferred_element_type=jnp.float32) + b1_ref[...]
    h = jnp.maximum(h, 0.0)

    # Layer 2 (hidden BN1 folded into w2/b2): Linear -> ReLU
    h = jnp.dot(w2_ref[...], h,
                preferred_element_type=jnp.float32) + b2_ref[...]
    h = jnp.maximum(h, 0.0)

    # Output layer (hidden BN2 folded into w3/b3)
    o_ref[...] = (jnp.dot(w3_ref[...], h,
                          preferred_element_type=jnp.float32)
                  + b3_ref[...]).astype(o_ref.dtype)


def run_mlp(xT, w1, b1, w2, b2, w3, b3, *, block_b=16384):
    """Fused MLP on the transposed activation layout.

    xT      : [F, B]      (batch on the lane axis)
    weights : [out, in]   biases: [out, 1]
    returns : [out_dim, B]

    B <= block_b  -> single invocation, grid=(), everything VMEM-resident.
    B  > block_b  -> batch tiled with grid=cdiv(B, block_b) (batch zero-padded to a
                     multiple of block_b); weights stay VMEM-resident via a constant
                     index_map; "parallel" semantics shards steps across v7x's 2 TCs.
    """
    F, B = xT.shape
    out_dim = w3.shape[0]
    weights = (w1, b1, w2, b2, w3, b3)

    if B <= block_b:
        # Single invocation: no grid / pipeline overhead at small & medium batch.
        return pl.pallas_call(
            mlp_kernel,
            out_shape=jax.ShapeDtypeStruct((out_dim, B), jnp.float32),
            grid=(),
            in_specs=[pl.BlockSpec(xT.shape, lambda: (0, 0))] + [
                pl.BlockSpec(a.shape, lambda: (0, 0)) for a in weights
            ],
            out_specs=pl.BlockSpec((out_dim, B), lambda: (0, 0)),
        )(xT, *weights)

    # Large batch: tile the (lane) batch axis; pad so every tile is full.
    assert block_b % 128 == 0, "block_b must be a multiple of 128 (lane tiling)"
    num_blocks = pl.cdiv(B, block_b)
    B_pad = num_blocks * block_b
    if B_pad != B:
        xT = jnp.pad(xT, ((0, 0), (0, B_pad - B)))

    outT = pl.pallas_call(
        mlp_kernel,
        out_shape=jax.ShapeDtypeStruct((out_dim, B_pad), jnp.float32),
        grid=(num_blocks,),
        in_specs=[pl.BlockSpec((F, block_b), lambda i: (0, i))] + [
            pl.BlockSpec(a.shape, lambda i: (0, 0)) for a in weights
        ],
        out_specs=pl.BlockSpec((out_dim, block_b), lambda i: (0, i)),
        compiler_params=pltpu.CompilerParams(
            dimension_semantics=("parallel",)),  # megacore sharding on v7x
    )(xT, *weights)
    return outT[:, :B]


# ---------------------------------------------------------------------------
# Parameter construction + forward wrapper (plain-JAX glue, jitted)
# ---------------------------------------------------------------------------
def fold_batchnorm(gamma, beta, running_mean, running_var, eps=1e-5):
    scale = gamma / jnp.sqrt(running_var + eps)
    shift = beta - running_mean * scale
    return scale, shift


def make_params(key, embedding_size, num_numerical_cols, layers, output_size):
    """Deterministic synthetic parameters mirroring the torch module shapes.
    Linear weights are stored in PyTorch orientation: [out_features, in_features]."""
    keys = iter(jax.random.split(key, 64))
    params = {}

    # nn.Embedding tables
    params["emb_tables"] = [
        jax.random.normal(next(keys), (ni, nf), jnp.float32) * 0.1
        for ni, nf in embedding_size
    ]

    # nn.BatchNorm1d(num_numerical_cols) running stats + affine
    params["bn_num"] = dict(
        gamma=1.0 + 0.1 * jax.random.normal(next(keys), (num_numerical_cols,), jnp.float32),
        beta=0.1 * jax.random.normal(next(keys), (num_numerical_cols,), jnp.float32),
        mean=0.1 * jax.random.normal(next(keys), (num_numerical_cols,), jnp.float32),
        var=jnp.abs(1.0 + 0.1 * jax.random.normal(next(keys), (num_numerical_cols,), jnp.float32)),
    )

    n_cat = sum(nf for _, nf in embedding_size)
    in_dim = n_cat + num_numerical_cols

    params["linears"] = []
    params["bns"] = []
    for l in layers:
        W = jax.random.normal(next(keys), (l, in_dim), jnp.float32) * (1.0 / jnp.sqrt(in_dim))
        b = 0.01 * jax.random.normal(next(keys), (l,), jnp.float32)
        params["linears"].append((W, b))
        params["bns"].append(dict(
            gamma=1.0 + 0.1 * jax.random.normal(next(keys), (l,), jnp.float32),
            beta=0.1 * jax.random.normal(next(keys), (l,), jnp.float32),
            mean=0.1 * jax.random.normal(next(keys), (l,), jnp.float32),
            var=jnp.abs(1.0 + 0.1 * jax.random.normal(next(keys), (l,), jnp.float32)),
        ))
        in_dim = l

    W_out = jax.random.normal(next(keys), (output_size, in_dim), jnp.float32) * (1.0 / jnp.sqrt(in_dim))
    b_out = 0.01 * jax.random.normal(next(keys), (output_size,), jnp.float32)
    params["out"] = (W_out, b_out)
    return params


@functools.partial(jax.jit, static_argnames=("block_b",))
def model_forward(params, x_categorical, x_numerical, *, block_b=16384):
    """Mirrors Model.forward (eval mode: dropout = identity, BN uses running stats).
    All BN affines are folded into the adjacent Linear layers and the whole MLP
    runs as one Pallas kernel in batch-on-lanes layout."""
    # Embedding lookups (glue: tiny gathers).
    embs = [jnp.take(tbl, x_categorical[:, d], axis=0)
            for d, tbl in enumerate(params["emb_tables"])]
    x_cat = jnp.concatenate(embs, axis=1)                                  # [B, n_cat]
    n_cat = x_cat.shape[1]
    x = jnp.concatenate([x_cat, x_numerical.astype(jnp.float32)], axis=1)  # [B, F]

    # Input affine: identity on embedding cols, folded BatchNorm1d on numeric cols.
    bn = params["bn_num"]
    num_scale, num_shift = fold_batchnorm(bn["gamma"], bn["beta"], bn["mean"], bn["var"])
    s0 = jnp.concatenate([jnp.ones((n_cat,), jnp.float32), num_scale])     # [F]
    t0 = jnp.concatenate([jnp.zeros((n_cat,), jnp.float32), num_shift])    # [F]

    (W1, b1), (W2, b2) = params["linears"]     # W: [out, in]
    bn1, bn2 = params["bns"]
    s1, t1 = fold_batchnorm(bn1["gamma"], bn1["beta"], bn1["mean"], bn1["var"])
    s2, t2 = fold_batchnorm(bn2["gamma"], bn2["beta"], bn2["mean"], bn2["var"])
    W3, b3 = params["out"]

    # Exact folds (weights in [out, in] orientation):
    #   W @ (x*s + t) + b  ==  (W * s[None,:]) @ x + (W @ t + b)
    W1f = W1 * s0[None, :]
    b1f = b1 + W1 @ t0
    W2f = W2 * s1[None, :]
    b2f = b2 + W2 @ t1
    W3f = W3 * s2[None, :]
    b3f = b3 + W3 @ t2

    outT = run_mlp(
        x.T,                       # [F, B]: batch on the lane axis
        W1f, b1f[:, None],
        W2f, b2f[:, None],
        W3f, b3f[:, None],
        block_b=block_b,
    )                              # [out_dim, B]
    return outT.T                  # [B, out_dim]


# ---------------------------------------------------------------------------
# Pure-JAX reference for sanity checking
# ---------------------------------------------------------------------------
def model_forward_ref(params, x_categorical, x_numerical):
    embs = [jnp.take(tbl, x_categorical[:, d], axis=0)
            for d, tbl in enumerate(params["emb_tables"])]
    x_cat = jnp.concatenate(embs, axis=1)
    bn = params["bn_num"]
    s, t = fold_batchnorm(bn["gamma"], bn["beta"], bn["mean"], bn["var"])
    x_num = x_numerical * s + t
    x = jnp.concatenate([x_cat, x_num], axis=1)
    for (W, b), bn_ in zip(params["linears"], params["bns"]):
        x = jnp.maximum(x @ W.T + b, 0.0)
        sl, tl = fold_batchnorm(bn_["gamma"], bn_["beta"], bn_["mean"], bn_["var"])
        x = x * sl + tl
    W_out, b_out = params["out"]
    return x @ W_out.T + b_out


if __name__ == "__main__":
    # Small synthetic config consistent with the module's __init__
    embedding_size = [(10, 4), (8, 3), (6, 2)]   # (num_categories, emb_dim) per cat col
    num_numerical_cols = 5
    layers = [32, 16]
    output_size = 3

    key = jax.random.PRNGKey(0)
    k_param, k_cat, k_num = jax.random.split(key, 3)
    params = make_params(k_param, embedding_size, num_numerical_cols, layers, output_size)

    def make_inputs(batch):
        x_cat = jnp.stack(
            [jax.random.randint(jax.random.fold_in(k_cat, d), (batch,), 0, ni)
             for d, (ni, _) in enumerate(embedding_size)], axis=1).astype(jnp.int32)
        x_num = jax.random.normal(jax.random.fold_in(k_num, batch),
                                  (batch, num_numerical_cols), jnp.float32)
        return x_cat, x_num

    # --- 1) Tiny batch (8 rows): grid=(), single-invocation kernel, strict f32. ---
    x_categorical, x_numerical = make_inputs(8)
    out = jax.block_until_ready(model_forward(params, x_categorical, x_numerical))
    ref = model_forward_ref(params, x_categorical, x_numerical)
    assert out.shape == (8, output_size)
    assert jnp.allclose(out, ref, atol=1e-5, rtol=1e-5), "mismatch vs JAX reference (B=8)"

    # --- 2) Medium batch (1024 rows): still a single invocation (no grid overhead). ---
    xc_med, xn_med = make_inputs(1024)
    out_med = jax.block_until_ready(model_forward(params, xc_med, xn_med))
    ref_med = model_forward_ref(params, xc_med, xn_med)
    assert out_med.shape == (1024, output_size)
    assert jnp.allclose(out_med, ref_med, atol=1e-4, rtol=1e-4), "mismatch vs ref (B=1024)"

    # --- 3) Tiled path: force a small block_b to exercise cdiv tiling + batch padding
    #        (in production the default block_b=16384 keeps batches this size untiled). ---
    xc_big, xn_big = make_inputs(2560)
    out_big = jax.block_until_ready(model_forward(params, xc_big, xn_big, block_b=1024))
    ref_big = model_forward_ref(params, xc_big, xn_big)
    assert out_big.shape == (2560, output_size)
    assert jnp.allclose(out_big, ref_big, atol=1e-4, rtol=1e-4), "mismatch vs ref (tiled)"

    print("KERNEL_OK")
</pallas_src>

<mosaic_0001>
module attributes {stable_mosaic.version = 11 : i64} {
  func.func @mlp_kernel(%arg0: memref<14x8xf32, #tpu.memory_space<vmem>>, %arg1: memref<32x14xf32, #tpu.memory_space<vmem>>, %arg2: memref<32x1xf32, #tpu.memory_space<vmem>>, %arg3: memref<16x32xf32, #tpu.memory_space<vmem>>, %arg4: memref<16x1xf32, #tpu.memory_space<vmem>>, %arg5: memref<3x16xf32, #tpu.memory_space<vmem>>, %arg6: memref<3x1xf32, #tpu.memory_space<vmem>>, %arg7: memref<3x8xf32, #tpu.memory_space<vmem>>) attributes {dimension_semantics = [], scalar_prefetch = 0 : i64, scratch_operands = 0 : i64, tpu.core_type = #tpu.core_type<tc>} {
    %c0 = arith.constant 0 : index
    %c0_0 = arith.constant 0 : index
    %0 = vector.load %arg1[%c0, %c0_0] : memref<32x14xf32, #tpu.memory_space<vmem>>, vector<32x14xf32>
    %c0_1 = arith.constant 0 : index
    %c0_2 = arith.constant 0 : index
    %1 = vector.load %arg0[%c0_1, %c0_2] : memref<14x8xf32, #tpu.memory_space<vmem>>, vector<14x8xf32>
    %cst = arith.constant dense<0.000000e+00> : vector<32x8xf32>
    %2 = tpu.matmul %0, %1, %cst {dimension_numbers = #tpu.dot_dimension_numbers<[1], [0], [0], [1], [0, 0, 1, 1], [], []>} : vector<32x14xf32>, vector<14x8xf32>, vector<32x8xf32> -> vector<32x8xf32>
    %c0_3 = arith.constant 0 : index
    %c0_4 = arith.constant 0 : index
    %3 = vector.load %arg2[%c0_3, %c0_4] : memref<32x1xf32, #tpu.memory_space<vmem>>, vector<32x1xf32>
    %4 = vector.broadcast %3 : vector<32x1xf32> to vector<32x8xf32>
    %5 = arith.addf %2, %4 : vector<32x8xf32>
    %cst_5 = arith.constant 0.000000e+00 : f32
    %6 = vector.broadcast %cst_5 : f32 to vector<32x8xf32>
    %7 = arith.maximumf %5, %6 : vector<32x8xf32>
    %c0_6 = arith.constant 0 : index
    %c0_7 = arith.constant 0 : index
    %8 = vector.load %arg3[%c0_6, %c0_7] : memref<16x32xf32, #tpu.memory_space<vmem>>, vector<16x32xf32>
    %cst_8 = arith.constant dense<0.000000e+00> : vector<16x8xf32>
    %9 = tpu.matmul %8, %7, %cst_8 {dimension_numbers = #tpu.dot_dimension_numbers<[1], [0], [0], [1], [0, 0, 1, 1], [], []>} : vector<16x32xf32>, vector<32x8xf32>, vector<16x8xf32> -> vector<16x8xf32>
    %c0_9 = arith.constant 0 : index
    %c0_10 = arith.constant 0 : index
    %10 = vector.load %arg4[%c0_9, %c0_10] : memref<16x1xf32, #tpu.memory_space<vmem>>, vector<16x1xf32>
    %11 = vector.broadcast %10 : vector<16x1xf32> to vector<16x8xf32>
    %12 = arith.addf %9, %11 : vector<16x8xf32>
    %cst_11 = arith.constant 0.000000e+00 : f32
    %13 = vector.broadcast %cst_11 : f32 to vector<16x8xf32>
    %14 = arith.maximumf %12, %13 : vector<16x8xf32>
    %c0_12 = arith.constant 0 : index
    %c0_13 = arith.constant 0 : index
    %15 = vector.load %arg5[%c0_12, %c0_13] : memref<3x16xf32, #tpu.memory_space<vmem>>, vector<3x16xf32>
    %cst_14 = arith.constant dense<0.000000e+00> : vector<3x8xf32>
    %16 = tpu.matmul %15, %14, %cst_14 {dimension_numbers = #tpu.dot_dimension_numbers<[1], [0], [0], [1], [0, 0, 1, 1], [], []>} : vector<3x16xf32>, vector<16x8xf32>, vector<3x8xf32> -> vector<3x8xf32>
    %c0_15 = arith.constant 0 : index
    %c0_16 = arith.constant 0 : index
    %17 = vector.load %arg6[%c0_15, %c0_16] : memref<3x1xf32, #tpu.memory_space<vmem>>, vector<3x1xf32>
    %18 = vector.broadcast %17 : vector<3x1xf32> to vector<3x8xf32>
    %19 = arith.addf %16, %18 : vector<3x8xf32>
    %c0_17 = arith.constant 0 : index
    %c0_18 = arith.constant 0 : index
    %20 = vector.load %arg7[%c0_17, %c0_18] : memref<3x8xf32, #tpu.memory_space<vmem>>, vector<3x8xf32>
    tpu.vector_store %arg7[%c0_17, %c0_18], %19 {strides = array<i32>} : memref<3x8xf32, #tpu.memory_space<vmem>>, vector<3x8xf32>,
    return
  }
}

</mosaic_0001>

<llo_original>
// kernel: model_forward.1
$region0: #{model_forward.1}
  #allocation0 [shape = 'u32[]', space=smem, size = 0x4, offset = 0x4, fixed_abs, tag = 'smem constant byte address 0x4 - core index']
  #allocation1 [shape = 'u32[144,128]{1,0:T(1,128)}', space=vmem, size = 0x12000, scoped, tag = 'internal scratch']
  %s0 = inlined_call_operand.vmem [shape: f32[14,8], index: 0, kind: input, shape index: {}]
  %s1 = inlined_call_operand.vmem [shape: f32[32,14], index: 1, kind: input, shape index: {}]
  %s2 = inlined_call_operand.vmem [shape: f32[32,1], index: 2, kind: input, shape index: {}]
  %s3 = inlined_call_operand.vmem [shape: f32[16,32], index: 3, kind: input, shape index: {}]
  %s4 = inlined_call_operand.vmem [shape: f32[16,1], index: 4, kind: input, shape index: {}]
  %s5 = inlined_call_operand.vmem [shape: f32[3,16], index: 5, kind: input, shape index: {}]
  %s6 = inlined_call_operand.vmem [shape: f32[3,1], index: 6, kind: input, shape index: {}]
  %s7 = inlined_call_operand.hbm [shape: f32[3,8], index: 7, kind: output, shape index: {}]
  %s8 = sld [smem:[#allocation0]]
  $region38: #{model_forward.1} parent=0
    _
  %s10 = ssub.s32 1, %s8
  %s11 = scalar_select 0, %s10, %s8
  $region1: #{model_forward.1} parent=0
    #allocation2 [shape = 'u8[2048]{0}', space=vmem, size = 0x800, scoped, tag = 'output window, operand 0, single buffered']
    #allocation3 [shape = 's32[1]{0}', space=sflag, size = 0x4, scoped, tag = 'scoped memory for model_forward.1']
    %12 = vsyncpa [#allocation3], 0
    // Predicated region
    $region2: #{model_forward.1} parent=1 // pred_check
      _
    $region3: #{model_forward.1} parent=1 // pred_check_branch
      %14 = sbr.rel (0) target = $region5
    $region4: #{model_forward.1} parent=1 // pred_region
      _
    $region5: #{model_forward.1} parent=1 // pred_fallthru
      _
    // Predicated region
    $region6: #{model_forward.1} parent=1 // pred_check
      _
    $region7: #{model_forward.1} parent=1 // pred_check_branch
      %16 = sbr.rel (0) target = $region9
    $region8: #{model_forward.1} parent=1 // pred_region
      _
    $region9: #{model_forward.1} parent=1 // pred_fallthru
      _
    // Predicated region
    $region10: #{model_forward.1} parent=1 // pred_check
      _
    $region11: #{model_forward.1} parent=1 // pred_check_branch
      %18 = sbr.rel (0) target = $region13
    $region12: #{model_forward.1} parent=1 // pred_region
      _
    $region13: #{model_forward.1} parent=1 // pred_fallthru
      _
    // Predicated region
    $region14: #{model_forward.1} parent=1 // pred_check
      _
    $region15: #{model_forward.1} parent=1 // pred_check_branch
      %20 = sbr.rel (0) target = $region17
    $region16: #{model_forward.1} parent=1 // pred_region
      _
    $region17: #{model_forward.1} parent=1 // pred_fallthru
      _
    // Predicated region
    $region18: #{model_forward.1} parent=1 // pred_check
      _
    $region19: #{model_forward.1} parent=1 // pred_check_branch
      %22 = sbr.rel (0) target = $region21
    $region20: #{model_forward.1} parent=1 // pred_region
      _
    $region21: #{model_forward.1} parent=1 // pred_fallthru
      _
    // Predicated region
    $region22: #{model_forward.1} parent=1 // pred_check
      _
    $region23: #{model_forward.1} parent=1 // pred_check_branch
      %24 = sbr.rel (0) target = $region25
    $region24: #{model_forward.1} parent=1 // pred_region
      _
    $region25: #{model_forward.1} parent=1 // pred_fallthru
      _
    // Predicated region
    $region26: #{model_forward.1} parent=1 // pred_check
      _
    $region27: #{model_forward.1} parent=1 // pred_check_branch
      %26 = sbr.rel (0) target = $region29
    $region28: #{model_forward.1} parent=1 // pred_region
      _
    $region29: #{model_forward.1} parent=1 // pred_fallthru
      _
    %v27 = vld [vmem:[%s1] sm:$0xff]
    %v28 = vld [vmem:[%s1 + $0x8] sm:$0xff]
    %v29 = vld [vmem:[%s1 + $0x10] sm:$0xff]
    %v30 = vld [vmem:[%s1 + $0x18] sm:$0xff]
    %v31 = vld [vmem:[%s0] sm:$0xff]
    %v32 = vld [vmem:[%s0 + $0x8] sm:$0x3f]
    %v33 = vld [vmem:[%s2] sm:$0xff]
    %v34 = vld [vmem:[%s2 + $0x8] sm:$0xff]
    %v35 = vld [vmem:[%s2 + $0x10] sm:$0xff]
    %v36 = vld [vmem:[%s2 + $0x18] sm:$0xff]
    %38 = vset.pattern.permute.xlu0 0
    %39 = vperm.xlu0 %38, %v33
    %v40 = vpop.permute.xlu0 %39
    %43 = vset.pattern.permute.xlu0 0
    %44 = vperm.xlu0 %43, %v34
    %v45 = vpop.permute.xlu0 %44
    %48 = vset.pattern.permute.xlu0 0
    %49 = vperm.xlu0 %48, %v35
    %v50 = vpop.permute.xlu0 %49
    %53 = vset.pattern.permute.xlu0 0
    %54 = vperm.xlu0 %53, %v36
    %v55 = vpop.permute.xlu0 %54
    %vm57 = vcmask 113664
    %v59 = vsel %vm57, %v27, 0
    %v62 = vsel %vm57, %v28, 0
    %v65 = vsel %vm57, %v29, 0
    %v68 = vsel %vm57, %v30, 0
    %vm70 = vcmask 1045504
    %v72 = vsel %vm70, %v32, 0
    %74 = vmatprep.subr.mxu0 0.0
    %75 = vmatpush1.msra.mxu0 0.0
    %76 = vmatprep.subr.mxu0 0.0
    %77 = vmatpush1.msra.mxu0 0.0
    %78 = vmatprep.subr.mxu0 0.0
    %79 = vmatpush1.msra.mxu0 0.0
    %80 = vmatprep.subr.mxu0 0.0
    %81 = vmatpush1.msra.mxu0 0.0
    %82 = vmatprep.subr.mxu0 0.0
    %83 = vmatpush1.msra.mxu0 0.0
    %84 = vmatprep.subr.mxu0 0.0
    %85 = vmatpush1.msra.mxu0 0.0
    %86 = vmatprep.subr.mxu0 0.0
    %87 = vmatpush1.msra.mxu0 0.0
    %88 = vmatprep.subr.mxu0 0.0
    %89 = vmatpush1.msra.mxu0 0.0
    %90 = vmatprep.subr.mxu0 0.0
    %91 = vmatpush1.msra.mxu0 0.0
    %92 = vmatprep.subr.mxu0 0.0
    %93 = vmatpush1.msra.mxu0 0.0
    %94 = vmatprep.subr.mxu0 0.0
    %95 = vmatpush1.msra.mxu0 0.0
    %96 = vmatprep.subr.mxu0 0.0
    %97 = vmatpush1.msra.mxu0 0.0
    %98 = vmatprep.subr.mxu0 0.0
    %99 = vmatpush1.msra.mxu0 0.0
    %100 = vmatprep.subr.mxu0 0.0
    %101 = vmatpush1.msra.mxu0 0.0
    %102 = vmatprep.subr.mxu0 0.0
    %103 = vmatpush1.msra.mxu0 %v72
    %104 = vmatprep.subr.mxu0 0.0
    %105 = vmatpush1.msra.mxu0 %v31
    %106 = vmatprep.subr.mxu0 0.0
    %107 = vmatpush2.msra.mxu0 0.0
    %108 = vmatprep.subr.mxu0 0.0
    %109 = vmatpush2.msra.mxu0 0.0
    %110 = vmatprep.subr.mxu0 0.0
    %111 = vmatpush2.msra.mxu0 0.0
    %112 = vmatprep.subr.mxu0 0.0
    %113 = vmatpush2.msra.mxu0 0.0
    %114 = vmatprep.subr.mxu0 0.0
    %115 = vmatpush2.msra.mxu0 0.0
    %116 = vmatprep.subr.mxu0 0.0
    %117 = vmatpush2.msra.mxu0 0.0
    %118 = vmatprep.subr.mxu0 0.0
    %119 = vmatpush2.msra.mxu0 0.0
    %120 = vmatprep.subr.mxu0 0.0
    %121 = vmatpush2.msra.mxu0 0.0
    %122 = vmatprep.subr.mxu0 0.0
    %123 = vmatpush2.msra.mxu0 0.0
    %124 = vmatprep.subr.mxu0 0.0
    %125 = vmatpush2.msra.mxu0 0.0
    %126 = vmatprep.subr.mxu0 0.0
    %127 = vmatpush2.msra.mxu0 0.0
    %128 = vmatprep.subr.mxu0 0.0
    %129 = vmatpush2.msra.mxu0 0.0
    %130 = vmatprep.subr.mxu0 0.0
    %131 = vmatpush2.msra.mxu0 0.0
    %132 = vmatprep.subr.mxu0 0.0
    %133 = vmatpush2.msra.mxu0 0.0
    %134 = vmatprep.subr.mxu0 0.0
    %135 = vmatpush2.msra.mxu0 0.0
    %136 = vmatprep.subr.mxu0 0.0
    %137 = vmatpush2.msra.mxu0 0.0
    %138 = vmatprep.mubr.f32.mxu0 0.0
    %139 = vmatmul.mubr.f32.gmra.mxu0 %v59
    %v140 = vpop.f32.mrf.mxu0
    %v141 = vadd.f32 %v40, %v140
    %v142 = vpop.f32.mrf.mxu0
    %143 = vmatprep.mubr.f32.mxu0 0.0
    %144 = vmatmul.mubr.f32.gmra.mxu0 %v62
    %v145 = vpop.f32.mrf.mxu0
    %v146 = vadd.f32 %v45, %v145
    %v147 = vpop.f32.mrf.mxu0
    %148 = vmatprep.mubr.f32.mxu0 0.0
    %149 = vmatmul.mubr.f32.gmra.mxu0 %v65
    %v150 = vpop.f32.mrf.mxu0
    %v151 = vadd.f32 %v50, %v150
    %v152 = vpop.f32.mrf.mxu0
    %153 = vmatprep.mubr.f32.mxu0 0.0
    %154 = vmatmul.mubr.f32.gmra.mxu0 %v68
    %v155 = vpop.f32.mrf.mxu0
    %v156 = vadd.f32 %v55, %v155
    %v157 = vpop.f32.mrf.mxu0
    %158 = vdwg.mxu0
    %v159 = vmax.f32 %v141, 0.0
    %v160 = vmax.f32 %v146, 0.0
    %v161 = vmax.f32 %v151, 0.0
    %v162 = vmax.f32 %v156, 0.0
    %v163 = vld [vmem:[%s3] sm:$0xff]
    %v164 = vld [vmem:[%s3 + $0x8] sm:$0xff]
    %v165 = vld [vmem:[%s4] sm:$0xff]
    %v166 = vld [vmem:[%s4 + $0x8] sm:$0xff]
    %168 = vset.pattern.permute.xlu0 0
    %169 = vperm.xlu0 %168, %v165
    %v170 = vpop.permute.xlu0 %169
    %173 = vset.pattern.permute.xlu0 0
    %174 = vperm.xlu0 %173, %v166
    %v175 = vpop.permute.xlu0 %174
    %vm177 = vcmask 261120
    %v179 = vsel %vm177, %v163, 0
    %v182 = vsel %vm177, %v164, 0
    %184 = vmatprep.subr.mxu0 0.0
    %185 = vmatpush1.msra.mxu0 0.0
    %186 = vmatprep.subr.mxu0 0.0
    %187 = vmatpush1.msra.mxu0 0.0
    %188 = vmatprep.subr.mxu0 0.0
    %189 = vmatpush1.msra.mxu0 0.0
    %190 = vmatprep.subr.mxu0 0.0
    %191 = vmatpush1.msra.mxu0 0.0
    %192 = vmatprep.subr.mxu0 0.0
    %193 = vmatpush1.msra.mxu0 0.0
    %194 = vmatprep.subr.mxu0 0.0
    %195 = vmatpush1.msra.mxu0 0.0
    %196 = vmatprep.subr.mxu0 0.0
    %197 = vmatpush1.msra.mxu0 0.0
    %198 = vmatprep.subr.mxu0 0.0
    %199 = vmatpush1.msra.mxu0 0.0
    %200 = vmatprep.subr.mxu0 0.0
    %201 = vmatpush1.msra.mxu0 0.0
    %202 = vmatprep.subr.mxu0 0.0
    %203 = vmatpush1.msra.mxu0 0.0
    %204 = vmatprep.subr.mxu0 0.0
    %205 = vmatpush1.msra.mxu0 0.0
    %206 = vmatprep.subr.mxu0 0.0
    %207 = vmatpush1.msra.mxu0 0.0
    %208 = vmatprep.subr.mxu0 0.0
    %209 = vmatpush1.msra.mxu0 %v162
    %210 = vmatprep.subr.mxu0 0.0
    %211 = vmatpush1.msra.mxu0 %v161
    %212 = vmatprep.subr.mxu0 0.0
    %213 = vmatpush1.msra.mxu0 %v160
    %214 = vmatprep.subr.mxu0 0.0
    %215 = vmatpush1.msra.mxu0 %v159
    %216 = vmatprep.subr.mxu0 0.0
    %217 = vmatpush2.msra.mxu0 0.0
    %218 = vmatprep.subr.mxu0 0.0
    %219 = vmatpush2.msra.mxu0 0.0
    %220 = vmatprep.subr.mxu0 0.0
    %221 = vmatpush2.msra.mxu0 0.0
    %222 = vmatprep.subr.mxu0 0.0
    %223 = vmatpush2.msra.mxu0 0.0
    %224 = vmatprep.subr.mxu0 0.0
    %225 = vmatpush2.msra.mxu0 0.0
    %226 = vmatprep.subr.mxu0 0.0
    %227 = vmatpush2.msra.mxu0 0.0
    %228 = vmatprep.subr.mxu0 0.0
    %229 = vmatpush2.msra.mxu0 0.0
    %230 = vmatprep.subr.mxu0 0.0
    %231 = vmatpush2.msra.mxu0 0.0
    %232 = vmatprep.subr.mxu0 0.0
    %233 = vmatpush2.msra.mxu0 0.0
    %234 = vmatprep.subr.mxu0 0.0
    %235 = vmatpush2.msra.mxu0 0.0
    %236 = vmatprep.subr.mxu0 0.0
    %237 = vmatpush2.msra.mxu0 0.0
    %238 = vmatprep.subr.mxu0 0.0
    %239 = vmatpush2.msra.mxu0 0.0
    %240 = vmatprep.subr.mxu0 0.0
    %241 = vmatpush2.msra.mxu0 0.0
    %242 = vmatprep.subr.mxu0 0.0
    %243 = vmatpush2.msra.mxu0 0.0
    %244 = vmatprep.subr.mxu0 0.0
    %245 = vmatpush2.msra.mxu0 0.0
    %246 = vmatprep.subr.mxu0 0.0
    %247 = vmatpush2.msra.mxu0 0.0
    %248 = vmatprep.mubr.f32.mxu0 0.0
    %249 = vmatmul.mubr.f32.gmra.mxu0 %v179
    %v250 = vpop.f32.mrf.mxu0
    %v251 = vadd.f32 %v170, %v250
    %v252 = vpop.f32.mrf.mxu0
    %253 = vmatprep.mubr.f32.mxu0 0.0
    %254 = vmatmul.mubr.f32.gmra.mxu0 %v182
    %v255 = vpop.f32.mrf.mxu0
    %v256 = vadd.f32 %v175, %v255
    %v257 = vpop.f32.mrf.mxu0
    %258 = vdwg.mxu0
    %v259 = vmax.f32 %v251, 0.0
    %v260 = vmax.f32 %v256, 0.0
    %v261 = vld [vmem:[%s5] sm:$0x7]
    %v262 = vld [vmem:[%s6] sm:$0x7]
    %264 = vset.pattern.permute.xlu0 0
    %265 = vperm.xlu0 %264, %v262
    %v266 = vpop.permute.xlu0 %265
    %vm268 = vcmask 130048
    %v270 = vsel %vm268, %v261, 0
    %272 = vmatprep.subr.mxu0 0.0
    %273 = vmatpush1.msra.mxu0 0.0
    %274 = vmatprep.subr.mxu0 0.0
    %275 = vmatpush1.msra.mxu0 0.0
    %276 = vmatprep.subr.mxu0 0.0
    %277 = vmatpush1.msra.mxu0 0.0
    %278 = vmatprep.subr.mxu0 0.0
    %279 = vmatpush1.msra.mxu0 0.0
    %280 = vmatprep.subr.mxu0 0.0
    %281 = vmatpush1.msra.mxu0 0.0
    %282 = vmatprep.subr.mxu0 0.0
    %283 = vmatpush1.msra.mxu0 0.0
    %284 = vmatprep.subr.mxu0 0.0
    %285 = vmatpush1.msra.mxu0 0.0
    %286 = vmatprep.subr.mxu0 0.0
    %287 = vmatpush1.msra.mxu0 0.0
    %288 = vmatprep.subr.mxu0 0.0
    %289 = vmatpush1.msra.mxu0 0.0
    %290 = vmatprep.subr.mxu0 0.0
    %291 = vmatpush1.msra.mxu0 0.0
    %292 = vmatprep.subr.mxu0 0.0
    %293 = vmatpush1.msra.mxu0 0.0
    %294 = vmatprep.subr.mxu0 0.0
    %295 = vmatpush1.msra.mxu0 0.0
    %296 = vmatprep.subr.mxu0 0.0
    %297 = vmatpush1.msra.mxu0 0.0
    %298 = vmatprep.subr.mxu0 0.0
    %299 = vmatpush1.msra.mxu0 0.0
    %300 = vmatprep.subr.mxu0 0.0
    %301 = vmatpush1.msra.mxu0 %v260
    %302 = vmatprep.subr.mxu0 0.0
    %303 = vmatpush1.msra.mxu0 %v259
    %304 = vmatprep.subr.mxu0 0.0
    %305 = vmatpush2.msra.mxu0 0.0
    %306 = vmatprep.subr.mxu0 0.0
    %307 = vmatpush2.msra.mxu0 0.0
    %308 = vmatprep.subr.mxu0 0.0
    %309 = vmatpush2.msra.mxu0 0.0
    %310 = vmatprep.subr.mxu0 0.0
    %311 = vmatpush2.msra.mxu0 0.0
    %312 = vmatprep.subr.mxu0 0.0
    %313 = vmatpush2.msra.mxu0 0.0
    %314 = vmatprep.subr.mxu0 0.0
    %315 = vmatpush2.msra.mxu0 0.0
    %316 = vmatprep.subr.mxu0 0.0
    %317 = vmatpush2.msra.mxu0 0.0
    %318 = vmatprep.subr.mxu0 0.0
    %319 = vmatpush2.msra.mxu0 0.0
    %320 = vmatprep.subr.mxu0 0.0
    %321 = vmatpush2.msra.mxu0 0.0
    %322 = vmatprep.subr.mxu0 0.0
    %323 = vmatpush2.msra.mxu0 0.0
    %324 = vmatprep.subr.mxu0 0.0
    %325 = vmatpush2.msra.mxu0 0.0
    %326 = vmatprep.subr.mxu0 0.0
    %327 = vmatpush2.msra.mxu0 0.0
    %328 = vmatprep.subr.mxu0 0.0
    %329 = vmatpush2.msra.mxu0 0.0
    %330 = vmatprep.subr.mxu0 0.0
    %331 = vmatpush2.msra.mxu0 0.0
    %332 = vmatprep.subr.mxu0 0.0
    %333 = vmatpush2.msra.mxu0 0.0
    %334 = vmatprep.subr.mxu0 0.0
    %335 = vmatpush2.msra.mxu0 0.0
    %336 = vmatprep.mubr.f32.mxu0 0.0
    %337 = vmatmul.mubr.f32.gmra.mxu0 %v270
    %v338 = vpop.f32.mrf.mxu0
    %v339 = vadd.f32 %v266, %v338
    %v340 = vpop.f32.mrf.mxu0
    %341 = vdwg.mxu0
    %vm342 = vcmask 59392
    %343 = vst.msk [vmem:[#allocation2] sm:$0x7] %vm342, %v339
    // Predicated region
    $region30: #{model_forward.1} parent=1 // pred_check
      _
    $region31: #{model_forward.1} parent=1 // pred_check_branch
      %345 = sbr.rel (0) target = $region33
    $region32: #{model_forward.1} parent=1 // pred_region
      %s347 = ssub.s32 64, 64
      %348 = vsyncadd [#allocation3], %s347
      %s350 = sshll.u32 [#allocation2], 4
      %s351 = int_to_ptr.vmem [resolvable:$true] %s350
      %353 = dma.vmem_to_hbm [thread:$0]  %s351, 64, %s7, [#allocation3]
    $region33: #{model_forward.1} parent=1 // pred_fallthru
      _
    // Predicated region
    $region34: #{model_forward.1} parent=1 // pred_check
      _
    $region35: #{model_forward.1} parent=1 // pred_check_branch
      %355 = sbr.rel (0) target = $region37
    $region36: #{model_forward.1} parent=1 // pred_region
      %356 = dma.done [#allocation3], 64
    $region37: #{model_forward.1} parent=1 // pred_fallthru
      _
    %357 = vsyncpa [#allocation3], 1

</llo_original>
